<compile_context>
chip_gen: v6e
topology: v6e:2x2x1
jax: 0.10.0
libtpu: 0.0.40
codegen_flags: <defaults>
</compile_context>

<pallas_src>
import jax
import jax.numpy as jnp
from jax.experimental import pallas as pl
from jax.experimental.pallas import tpu as pltpu

N_POINTS = 512   # matches torch.rand((512, 2)) buffer in __init__
MAX_CHUNK = 256  # predictions per grid step (multiple of 8, VMEM-safe on all gens)


def _rot_shift_kernel(params_ref, xT_ref, outT_ref):
    """One grid step = one chunk of Bc (angle, shift) predictions.

    params_ref : VMEM, (Bc, 3)    -- [angle, shift0, shift1] per prediction
    xT_ref     : VMEM, (2, N)     -- fixed points, transposed (resident)
    outT_ref   : VMEM, (2, Bc, N) -- rotated + shifted points for this chunk
    """
    a = params_ref[:, 0:1]                 # (Bc, 1)
    # NOTE: the PyTorch source names them s/c swapped on purpose; we reproduce
    # its exact semantics: s = cos(angle), c = sin(angle),
    # rot_back = [[s, -c], [c, s]].
    s = jnp.cos(a)                         # (Bc, 1)  one EUP vector op per chunk
    c = jnp.sin(a)                         # (Bc, 1)
    sh0 = params_ref[:, 1:2]               # (Bc, 1)
    sh1 = params_ref[:, 2:3]               # (Bc, 1)

    x0 = xT_ref[0:1, :]                    # (1, N)  == x[:, 0]
    x1 = xT_ref[1:2, :]                    # (1, N)  == x[:, 1]

    # out[:, 0] = x0 * rot[0,0] + x1 * rot[1,0] + shift[0]   -> (Bc, N) slab
    outT_ref[0, :, :] = s * x0 + c * x1 + sh0
    # out[:, 1] = x0 * rot[0,1] + x1 * rot[1,1] + shift[1]   -> (Bc, N) slab
    outT_ref[1, :, :] = (-c) * x0 + s * x1 + sh1


def make_rotation_shift_solver(x):
    """Build Pallas-backed forward fns for the fixed point buffer `x` (N, 2).

    Returns:
      forward(angle_pred, shift_pred)  -> (N, 2)    PyTorch-parity layout
      forward_batched(angles, shifts)  -> (2, B, N) lane-dense, chunked batch,
                                          one pallas_call for all B predictions
    """
    xT_const = jnp.transpose(jnp.asarray(x, jnp.float32))  # (2, N), done ONCE
    n = xT_const.shape[1]

    def _round_up(v, m):
        return ((v + m - 1) // m) * m

    def _batched_call(params, xT):
        # params: (Bp, 3) float32, Bp a multiple of the chunk size.
        bp = params.shape[0]
        bc = min(MAX_CHUNK, bp)            # chunk size, multiple of 8
        grid = (bp // bc,)
        return pl.pallas_call(
            _rot_shift_kernel,
            out_shape=jax.ShapeDtypeStruct((2, bp, n), jnp.float32),
            grid=grid,
            in_specs=[
                # (Bc, 3) params chunk in VMEM (last dim == full dim -> legal)
                pl.BlockSpec((bc, 3), lambda i: (i, 0)),
                # constant xT: index_map always (0, 0) -> stays resident
                pl.BlockSpec((2, n), lambda i: (0, 0)),
            ],
            out_specs=pl.BlockSpec((2, bc, n), lambda i: (0, i, 0)),
            compiler_params=pltpu.CompilerParams(
                dimension_semantics=("parallel",)),
            cost_estimate=pl.CostEstimate(
                flops=8 * bp * n,
                transcendentals=2 * bp,
                bytes_accessed=2 * bp * n * 4 + 2 * n * 4 + bp * 3 * 4),
        )(params, xT)

    def _pack_params(angles, shifts):
        # angles: (B,), shifts: (B, 2) -> (Bp, 3) padded to a chunk multiple.
        b = angles.shape[0]
        bp = _round_up(b, min(MAX_CHUNK, _round_up(b, 8)))
        p = jnp.concatenate(
            [angles.reshape(-1, 1).astype(jnp.float32),
             shifts.reshape(-1, 2).astype(jnp.float32)], axis=1)      # (B, 3)
        return jnp.pad(p, ((0, bp - b), (0, 0)))                      # (Bp, 3)

    @jax.jit
    def forward(angle_pred, shift_pred):
        # Single prediction, PyTorch layout (N, 2).  The (N, 2) view is
        # required for module parity; batched consumers should prefer
        # forward_batched, which returns the lane-dense layout directly.
        params = _pack_params(angle_pred.reshape(1), shift_pred.reshape(1, 2))
        outT = _batched_call(params, xT_const)[:, 0, :]               # (2, N)
        return jnp.transpose(outT)                                    # (N, 2)

    @jax.jit
    def forward_batched(angles, shifts):
        # angles: (B,), shifts: (B, 2) -> (2, B, N) lane-dense output,
        # one pallas_call, Bc predictions per grid step, no transposes.
        b = angles.shape[0]
        params = _pack_params(angles, shifts)
        out = _batched_call(params, xT_const)                         # (2, Bp, N)
        return out[:, :b, :]                                          # (2, B, N)

    return forward, forward_batched


def _reference(angle_pred, shift_pred, x):
    s = jnp.cos(angle_pred[0])
    c = jnp.sin(angle_pred[0])
    rot_back = jnp.stack([jnp.stack([s, -c]), jnp.stack([c, s])])
    return jnp.matmul(x, rot_back) + shift_pred


if __name__ == "__main__":
    key = jax.random.PRNGKey(0)
    k_x, k_a, k_s = jax.random.split(key, 3)

    # Buffer self.x = torch.rand((512, 2)) -> deterministic uniform [0, 1)
    x = jax.random.uniform(k_x, (N_POINTS, 2), dtype=jnp.float32)

    forward, forward_batched = make_rotation_shift_solver(x)

    # ---- single prediction (PyTorch-parity layout) -------------------------
    angle_pred = jnp.array([0.5], dtype=jnp.float32)
    shift_pred = jnp.array([[0.25, -0.75]], dtype=jnp.float32)

    out = forward(angle_pred, shift_pred)
    out = jax.block_until_ready(out)

    ref = _reference(angle_pred, shift_pred, x)
    assert out.shape == (N_POINTS, 2), out.shape
    assert jnp.allclose(out, ref, atol=1e-5, rtol=1e-5), "single-call mismatch"

    # ---- batched predictions: one pallas_call, chunked, lane-dense ---------
    B = 4
    angles = jax.random.uniform(k_a, (B,), dtype=jnp.float32) * 2.0 - 1.0
    shifts = jax.random.uniform(k_s, (B, 2), dtype=jnp.float32) * 4.0 - 2.0

    outs = forward_batched(angles, shifts)           # (2, B, N) lane-dense
    outs = jax.block_until_ready(outs)
    assert outs.shape == (2, B, N_POINTS), outs.shape
    for b in range(B):
        ref_b = _reference(angles[b:b + 1], shifts[b:b + 1], x)      # (N, 2)
        assert jnp.allclose(outs[:, b, :].T, ref_b, atol=1e-5, rtol=1e-5), (
            f"batched mismatch at b={b}")

    print("KERNEL_OK")
</pallas_src>

<mosaic_0001>
module attributes {stable_mosaic.version = 11 : i64} {
  func.func @_rot_shift_kernel(%arg0: i32, %arg1: memref<8x3xf32, #tpu.memory_space<vmem>>, %arg2: memref<2x512xf32, #tpu.memory_space<vmem>>, %arg3: memref<2x8x512xf32, #tpu.memory_space<vmem>>) attributes {dimension_semantics = [#tpu.dimension_semantics<parallel>], iteration_bounds = array<i64: 1>, scalar_prefetch = 0 : i64, scratch_operands = 0 : i64, tpu.core_type = #tpu.core_type<tc>, window_params = [{transform_indices = @transform_0, window_bounds = array<i64: 8, 3>}, {pipeline_mode = #tpu.pipeline_mode<synchronous>, transform_indices = @transform_1, window_bounds = array<i64: 2, 512>}, {transform_indices = @transform_2, window_bounds = array<i64: 2, 8, 512>}]} {
    %c0 = arith.constant 0 : index
    %c0_0 = arith.constant 0 : index
    %0 = vector.load %arg1[%c0, %c0_0] : memref<8x3xf32, #tpu.memory_space<vmem>>, vector<8x1xf32>
    %1 = math.cos %0 : vector<8x1xf32>
    %2 = math.sin %0 : vector<8x1xf32>
    %c0_1 = arith.constant 0 : index
    %c1 = arith.constant 1 : index
    %3 = vector.load %arg1[%c0_1, %c1] : memref<8x3xf32, #tpu.memory_space<vmem>>, vector<8x1xf32>
    %c0_2 = arith.constant 0 : index
    %c2 = arith.constant 2 : index
    %4 = vector.load %arg1[%c0_2, %c2] : memref<8x3xf32, #tpu.memory_space<vmem>>, vector<8x1xf32>
    %c0_3 = arith.constant 0 : index
    %c0_4 = arith.constant 0 : index
    %5 = vector.load %arg2[%c0_3, %c0_4] : memref<2x512xf32, #tpu.memory_space<vmem>>, vector<1x512xf32>
    %c1_5 = arith.constant 1 : index
    %c0_6 = arith.constant 0 : index
    %6 = vector.load %arg2[%c1_5, %c0_6] : memref<2x512xf32, #tpu.memory_space<vmem>>, vector<1x512xf32>
    %7 = vector.broadcast %1 : vector<8x1xf32> to vector<8x512xf32>
    %8 = vector.broadcast %5 : vector<1x512xf32> to vector<8x512xf32>
    %9 = arith.mulf %7, %8 : vector<8x512xf32>
    %10 = vector.broadcast %2 : vector<8x1xf32> to vector<8x512xf32>
    %11 = vector.broadcast %6 : vector<1x512xf32> to vector<8x512xf32>
    %12 = arith.mulf %10, %11 : vector<8x512xf32>
    %13 = arith.addf %9, %12 : vector<8x512xf32>
    %14 = vector.broadcast %3 : vector<8x1xf32> to vector<8x512xf32>
    %15 = arith.addf %13, %14 : vector<8x512xf32>
    %c0_7 = arith.constant 0 : index
    %c0_8 = arith.constant 0 : index
    %c0_9 = arith.constant 0 : index
    %16 = vector.load %arg3[%c0_7, %c0_8, %c0_9] : memref<2x8x512xf32, #tpu.memory_space<vmem>>, vector<1x8x512xf32>
    %17 = vector.shape_cast %16 : vector<1x8x512xf32> to vector<8x512xf32>
    %18 = vector.shape_cast %15 : vector<8x512xf32> to vector<1x8x512xf32>
    tpu.vector_store %arg3[%c0_7, %c0_8, %c0_9], %18 {strides = array<i32>} : memref<2x8x512xf32, #tpu.memory_space<vmem>>, vector<1x8x512xf32>,
    %cst = arith.constant 0.000000e+00 : f32
    %19 = vector.broadcast %cst : f32 to vector<8x1xf32>
    %20 = arith.subf %19, %2 : vector<8x1xf32>
    %21 = vector.broadcast %20 : vector<8x1xf32> to vector<8x512xf32>
    %22 = vector.broadcast %5 : vector<1x512xf32> to vector<8x512xf32>
    %23 = arith.mulf %21, %22 : vector<8x512xf32>
    %24 = vector.broadcast %1 : vector<8x1xf32> to vector<8x512xf32>
    %25 = vector.broadcast %6 : vector<1x512xf32> to vector<8x512xf32>
    %26 = arith.mulf %24, %25 : vector<8x512xf32>
    %27 = arith.addf %23, %26 : vector<8x512xf32>
    %28 = vector.broadcast %4 : vector<8x1xf32> to vector<8x512xf32>
    %29 = arith.addf %27, %28 : vector<8x512xf32>
    %c1_10 = arith.constant 1 : index
    %c0_11 = arith.constant 0 : index
    %c0_12 = arith.constant 0 : index
    %30 = vector.load %arg3[%c1_10, %c0_11, %c0_12] : memref<2x8x512xf32, #tpu.memory_space<vmem>>, vector<1x8x512xf32>
    %31 = vector.shape_cast %30 : vector<1x8x512xf32> to vector<8x512xf32>
    %32 = vector.shape_cast %29 : vector<8x512xf32> to vector<1x8x512xf32>
    tpu.vector_store %arg3[%c1_10, %c0_11, %c0_12], %32 {strides = array<i32>} : memref<2x8x512xf32, #tpu.memory_space<vmem>>, vector<1x8x512xf32>,
    return
  }
  func.func @transform_0(%arg0: i32) -> (i32, i32) {
    %c0_i32 = arith.constant 0 : i32
    %c0_i32_0 = arith.constant 0 : i32
    return %arg0, %c0_i32 : i32, i32
  }
  func.func @transform_1(%arg0: i32) -> (i32, i32) {
    %c0_i32 = arith.constant 0 : i32
    %c0_i32_0 = arith.constant 0 : i32
    %c0_i32_1 = arith.constant 0 : i32
    return %c0_i32, %c0_i32_0 : i32, i32
  }
  func.func @transform_2(%arg0: i32) -> (i32, i32, i32) {
    %c0_i32 = arith.constant 0 : i32
    %c0_i32_0 = arith.constant 0 : i32
    %c0_i32_1 = arith.constant 0 : i32
    return %c0_i32, %arg0, %c0_i32_0 : i32, i32, i32
  }
}

</mosaic_0001>

<llo_original>
// kernel: forward.1
$region0: #{forward.1}
  #allocation0 [shape = 'u32[]', space=smem, size = 0x4, offset = 0x4, fixed_abs, tag = 'smem constant byte address 0x4 - core index']
  #allocation1 [shape = 'u32[144,128]{1,0:T(1,128)}', space=vmem, size = 0x12000, scoped, tag = 'internal scratch']
  %s0 = inlined_call_operand.vmem [shape: f32[8,3], index: 0, kind: input, shape index: {}]
  %s1 = inlined_call_operand.vmem [shape: f32[2,512], index: 1, kind: input, shape index: {}]
  %s2 = inlined_call_operand.vmem [shape: f32[2,8,512], index: 2, kind: output, shape index: {}]
  %s3 = sld [smem:[#allocation0]]
  $region18: #{forward.1} parent=0
    _
  %s5 = ssub.s32 1, %s3
  %s6 = scalar_select 0, %s5, %s3
  // Predicated region
  $region2: #{forward.1} parent=0 // pred_check
    _
  $region3: #{forward.1} parent=0 // pred_check_branch
    %8 = sbr.rel (0) target = $region5
  $region4: #{forward.1} parent=0 // pred_region
    _
  $region5: #{forward.1} parent=0 // pred_fallthru
    _
  // Predicated region
  $region6: #{forward.1} parent=0 // pred_check
    _
  $region7: #{forward.1} parent=0 // pred_check_branch
    %10 = sbr.rel (0) target = $region9
  $region8: #{forward.1} parent=0 // pred_region
    _
  $region9: #{forward.1} parent=0 // pred_fallthru
    _
  %v11 = vld [vmem:[%s0] sm:$0xff]
  %v12 = vand.u32 2147483647, %v11
  %vm13 = vcmp.le.f32.partialorder %v12, 0.7853982
  %vm14 = vcmp.lt.s32.totalorder %v11, 0
  %v15 = vand.u32 %v11, 2139095040
  %v16 = vshrl.u32 %v15, 23
  %v17 = vsub.s32 %v16, 127
  %v18 = vand.u32 2147483647, %v11
  %v19 = vand.u32 %v18, 8388607
  %v20 = vor.u32 %v19, 8388608
  %v21 = vsub.s32 0, %v20
  %v22 = vadd.s32 %v17, 1
  %vm23 = vcmp.gt.s32.totalorder %v22, 0
  %v24 = vsel %vm23, %v22, 0
  %v25 = vshrl.u32 %v24, 5
  %v26 = vand.u32 %v24, 31
  %v27 = vsub.s32 32, %v26
  %v28 = vshrl.u32 683565275, %v27
  %v29 = vshll.u32 683565275, %v26
  %v30 = vshrl.u32 2475754826, %v27
  %v31 = vor.u32 %v29, %v30
  %v32 = vshll.u32 2475754826, %v26
  %v33 = vshrl.u32 2131351028, %v27
  %v34 = vor.u32 %v32, %v33
  %v35 = vshll.u32 2131351028, %v26
  %v36 = vshrl.u32 2102212464, %v27
  %v37 = vor.u32 %v35, %v36
  %v38 = vshll.u32 2102212464, %v26
  %v39 = vshrl.u32 920167782, %v27
  %v40 = vor.u32 %v38, %v39
  %v41 = vshll.u32 920167782, %v26
  %v42 = vshrl.u32 1326507024, %v27
  %v43 = vor.u32 %v41, %v42
  %vm44 = vcmp.lt.s32.totalorder %v25, 1
  %vm45 = vcmp.lt.s32.totalorder %v25, 2
  %vm46 = vcmp.lt.s32.totalorder %v25, 3
  %vm47 = vcmp.lt.s32.totalorder %v25, 4
  %v48 = vsel %vm44, %v28, %v31
  %v49 = vsel %vm47, %v37, 2102212464
  %v50 = vsel %vm46, %v34, %v49
  %v51 = vsel %vm45, %v48, %v50
  %v52 = vsel %vm44, %v31, %v34
  %v53 = vsel %vm47, %v40, 920167782
  %v54 = vsel %vm46, %v37, %v53
  %v55 = vsel %vm45, %v52, %v54
  %v56 = vsel %vm44, %v34, %v37
  %v57 = vsel %vm47, %v43, 1326507024
  %v58 = vsel %vm46, %v40, %v57
  %v59 = vsel %vm45, %v56, %v58
  %v60 = vshll.u32 %v20, 8
  %v61 = vmul.u32.u64.compose %v60, %v59
  %v62 = vextract.low.u32 %v61
  %v63 = vextract.high.u32 %v61
  %v64 = vmul.u32.u64.compose %v60, %v55
  %v65 = vextract.low.u32 %v64
  %v66 = vextract.high.u32 %v64
  %v67 = vmul.u32 %v60, %v51
  %v68 = vadd.s32 %v63, %v65
  %vm69 = vc.u32 %v63, %v65
  %v70 = vadd.s32 %v66, 1
  %v71 = vsel %vm69, %v70, %v66
  %v72 = vadd.s32 %v67, %v71
  %v73 = vadd.s32 %v72, 536870912
  %v74 = vshrl.u32 %v73, 30
  %v75 = vshll.u32 %v74, 30
  %v76 = vsub.s32 %v72, %v75
  %vm77 = vcmp.lt.s32.totalorder %v76, 0
  %v78 = vsub.s32 0, %v76
  %v79 = vsel %vm77, %v78, %v76
  %v80 = vclz %v79
  %v81 = vsub.s32 %v80, 2
  %vm82 = vcmp.gt.s32.totalorder 0, %v81
  %v83 = vsel %vm82, 0, %v81
  %v84 = vsub.s32 32, %v83
  %v85 = vshll.u32 %v76, %v83
  %v86 = vshrl.u32 %v68, %v84
  %v87 = vor.u32 %v85, %v86
  %v88 = vsub.s32 4294967266, %v83
  %v89 = vadd.s32 %v88, 127
  %v90 = vshll.u32 %v89, 23
  %v91 = vor.u32 4788187, %v90
  %v92 = vand.u32 2147483647, %v91
  %v94 = vcvt.s32.f32 %v87
  %v95 = vmul.f32 %v94, %v92
  %v96 = vxor.u32 %v95, 2147483648
  %v97 = vsel %vm14, %v96, %v95
  %v98 = vsub.s32 4, %v74
  %v99 = vsel %vm14, %v98, %v74
  %v100 = vsel %vm13, %v11, %v97
  %v101 = vsel %vm13, 0, %v99
  %v102 = vcosq.f32.pop %v100
  %v103 = vsinq.f32.pop %v100
  %vm104 = vweird.f32 %v11
  %v105 = vand.u32 %v101, 3
  %vm106 = vcmp.lt.s32.totalorder %v105, 2
  %vm107 = vcmp.eq.s32.totalorder %v105, 0
  %v108 = vxor.u32 %v103, 2147483648
  %v109 = vsel %vm107, %v102, %v108
  %vm110 = vcmp.eq.s32.totalorder %v105, 2
  %v111 = vxor.u32 %v102, 2147483648
  %v112 = vsel %vm110, %v111, %v103
  %v113 = vsel %vm106, %v109, %v112
  %v114 = vsel %vm104, nan, %v113
  %v115 = vand.u32 2147483647, %v11
  %vm116 = vcmp.le.f32.partialorder %v115, 0.7853982
  %vm117 = vcmp.lt.s32.totalorder %v11, 0
  %v118 = vand.u32 %v11, 2139095040
  %v119 = vshrl.u32 %v118, 23
  %v120 = vsub.s32 %v119, 127
  %v121 = vand.u32 2147483647, %v11
  %v122 = vand.u32 %v121, 8388607
  %v123 = vor.u32 %v122, 8388608
  %v124 = vsub.s32 0, %v123
  %v125 = vadd.s32 %v120, 1
  %vm126 = vcmp.gt.s32.totalorder %v125, 0
  %v127 = vsel %vm126, %v125, 0
  %v128 = vshrl.u32 %v127, 5
  %v129 = vand.u32 %v127, 31
  %v130 = vsub.s32 32, %v129
  %v131 = vshrl.u32 683565275, %v130
  %v132 = vshll.u32 683565275, %v129
  %v133 = vshrl.u32 2475754826, %v130
  %v134 = vor.u32 %v132, %v133
  %v135 = vshll.u32 2475754826, %v129
  %v136 = vshrl.u32 2131351028, %v130
  %v137 = vor.u32 %v135, %v136
  %v138 = vshll.u32 2131351028, %v129
  %v139 = vshrl.u32 2102212464, %v130
  %v140 = vor.u32 %v138, %v139
  %v141 = vshll.u32 2102212464, %v129
  %v142 = vshrl.u32 920167782, %v130
  %v143 = vor.u32 %v141, %v142
  %v144 = vshll.u32 920167782, %v129
  %v145 = vshrl.u32 1326507024, %v130
  %v146 = vor.u32 %v144, %v145
  %vm147 = vcmp.lt.s32.totalorder %v128, 1
  %vm148 = vcmp.lt.s32.totalorder %v128, 2
  %vm149 = vcmp.lt.s32.totalorder %v128, 3
  %vm150 = vcmp.lt.s32.totalorder %v128, 4
  %v151 = vsel %vm147, %v131, %v134
  %v152 = vsel %vm150, %v140, 2102212464
  %v153 = vsel %vm149, %v137, %v152
  %v154 = vsel %vm148, %v151, %v153
  %v155 = vsel %vm147, %v134, %v137
  %v156 = vsel %vm150, %v143, 920167782
  %v157 = vsel %vm149, %v140, %v156
  %v158 = vsel %vm148, %v155, %v157
  %v159 = vsel %vm147, %v137, %v140
  %v160 = vsel %vm150, %v146, 1326507024
  %v161 = vsel %vm149, %v143, %v160
  %v162 = vsel %vm148, %v159, %v161
  %v163 = vshll.u32 %v123, 8
  %v164 = vmul.u32.u64.compose %v163, %v162
  %v165 = vextract.low.u32 %v164
  %v166 = vextract.high.u32 %v164
  %v167 = vmul.u32.u64.compose %v163, %v158
  %v168 = vextract.low.u32 %v167
  %v169 = vextract.high.u32 %v167
  %v170 = vmul.u32 %v163, %v154
  %v171 = vadd.s32 %v166, %v168
  %vm172 = vc.u32 %v166, %v168
  %v173 = vadd.s32 %v169, 1
  %v174 = vsel %vm172, %v173, %v169
  %v175 = vadd.s32 %v170, %v174
  %v176 = vadd.s32 %v175, 536870912
  %v177 = vshrl.u32 %v176, 30
  %v178 = vshll.u32 %v177, 30
  %v179 = vsub.s32 %v175, %v178
  %vm180 = vcmp.lt.s32.totalorder %v179, 0
  %v181 = vsub.s32 0, %v179
  %v182 = vsel %vm180, %v181, %v179
  %v183 = vclz %v182
  %v184 = vsub.s32 %v183, 2
  %vm185 = vcmp.gt.s32.totalorder 0, %v184
  %v186 = vsel %vm185, 0, %v184
  %v187 = vsub.s32 32, %v186
  %v188 = vshll.u32 %v179, %v186
  %v189 = vshrl.u32 %v171, %v187
  %v190 = vor.u32 %v188, %v189
  %v191 = vsub.s32 4294967266, %v186
  %v192 = vadd.s32 %v191, 127
  %v193 = vshll.u32 %v192, 23
  %v194 = vor.u32 4788187, %v193
  %v195 = vand.u32 2147483647, %v194
  %v197 = vcvt.s32.f32 %v190
  %v198 = vmul.f32 %v197, %v195
  %v199 = vxor.u32 %v198, 2147483648
  %v200 = vsel %vm117, %v199, %v198
  %v201 = vsub.s32 4, %v177
  %v202 = vsel %vm117, %v201, %v177
  %v203 = vsel %vm116, %v11, %v200
  %v204 = vsel %vm116, 0, %v202
  %v205 = vcosq.f32.pop %v203
  %v206 = vsinq.f32.pop %v203
  %vm207 = vweird.f32 %v11
  %v208 = vadd.s32 %v204, 3
  %v209 = vand.u32 %v208, 3
  %vm210 = vcmp.lt.s32.totalorder %v209, 2
  %vm211 = vcmp.eq.s32.totalorder %v209, 0
  %v212 = vxor.u32 %v206, 2147483648
  %v213 = vsel %vm211, %v205, %v212
  %vm214 = vcmp.eq.s32.totalorder %v209, 2
  %v215 = vxor.u32 %v205, 2147483648
  %v216 = vsel %vm214, %v215, %v206
  %v217 = vsel %vm210, %v213, %v216
  %v218 = vsel %vm207, nan, %v217
  %v219 = vld [vmem:[%s1] ss:$2 sm:$0xf]
  %s220 = scalar_lea.vmem %s1, 1
  %v221 = vld [vmem:[%s220] ss:$2 sm:$0xf]
  %223 = vset.pattern.permute.xlu0 0
  %224 = vperm.xlu0 %223, %v114
  %v225 = vpop.permute.xlu0 %224
  %v228 = vlaneseq
  %v229 = vshrl.u32 %v228, 7
  %v230 = vsub.s32 0, %v229
  %v231 = vrot.slane %v219, %v230
  %v232 = vlaneseq
  %v233 = vshrl.u32 %v232, 7
  %v234 = vsub.s32 1, %v233
  %v235 = vrot.slane %v219, %v234
  %v236 = vlaneseq
  %v237 = vshrl.u32 %v236, 7
  %v238 = vsub.s32 2, %v237
  %v239 = vrot.slane %v219, %v238
  %v240 = vlaneseq
  %v241 = vshrl.u32 %v240, 7
  %v242 = vsub.s32 3, %v241
  %v243 = vrot.slane %v219, %v242
  %v248 = vmul.f32 %v225, %v231
  %v249 = vmul.f32 %v225, %v235
  %v250 = vmul.f32 %v225, %v239
  %v251 = vmul.f32 %v225, %v243
  %253 = vset.pattern.permute.xlu0 0
  %254 = vperm.xlu0 %253, %v218
  %v255 = vpop.permute.xlu0 %254
  %v258 = vlaneseq
  %v259 = vshrl.u32 %v258, 7
  %v260 = vsub.s32 0, %v259
  %v261 = vrot.slane %v221, %v260
  %v262 = vlaneseq
  %v263 = vshrl.u32 %v262, 7
  %v264 = vsub.s32 1, %v263
  %v265 = vrot.slane %v221, %v264
  %v266 = vlaneseq
  %v267 = vshrl.u32 %v266, 7
  %v268 = vsub.s32 2, %v267
  %v269 = vrot.slane %v221, %v268
  %v270 = vlaneseq
  %v271 = vshrl.u32 %v270, 7
  %v272 = vsub.s32 3, %v271
  %v273 = vrot.slane %v221, %v272
  %v278 = vmul.f32 %v255, %v261
  %v279 = vmul.f32 %v255, %v265
  %v280 = vmul.f32 %v255, %v269
  %v281 = vmul.f32 %v255, %v273
  %v282 = vadd.f32 %v248, %v278
  %v283 = vadd.f32 %v249, %v279
  %v284 = vadd.f32 %v250, %v280
  %v285 = vadd.f32 %v251, %v281
  %287 = vset.pattern.permute.xlu0 1
  %288 = vperm.xlu0 %287, %v11
  %v289 = vpop.permute.xlu0 %288
  %v291 = vadd.f32 %v282, %v289
  %v292 = vadd.f32 %v283, %v289
  %v293 = vadd.f32 %v284, %v289
  %v294 = vadd.f32 %v285, %v289
  %295 = vst [vmem:[%s2] sm:$0xff] %v291
  %296 = vst [vmem:[%s2 + $0x8] sm:$0xff] %v292
  %297 = vst [vmem:[%s2 + $0x10] sm:$0xff] %v293
  %298 = vst [vmem:[%s2 + $0x18] sm:$0xff] %v294
  %v299 = vsub.f32 0.0, %v218
  %301 = vset.pattern.permute.xlu0 0
  %302 = vperm.xlu0 %301, %v299
  %v303 = vpop.permute.xlu0 %302
  %v305 = vmul.f32 %v303, %v231
  %v306 = vmul.f32 %v303, %v235
  %v307 = vmul.f32 %v303, %v239
  %v308 = vmul.f32 %v303, %v243
  %v309 = vmul.f32 %v225, %v261
  %v310 = vmul.f32 %v225, %v265
  %v311 = vmul.f32 %v225, %v269
  %v312 = vmul.f32 %v225, %v273
  %v313 = vadd.f32 %v305, %v309
  %v314 = vadd.f32 %v306, %v310
  %v315 = vadd.f32 %v307, %v311
  %v316 = vadd.f32 %v308, %v312
  %317 = vset.pattern.permute.xlu0 2
  %318 = vperm.xlu0 %317, %v11
  %v319 = vpop.permute.xlu0 %318
  %v321 = vadd.f32 %v313, %v319
  %v322 = vadd.f32 %v314, %v319
  %v323 = vadd.f32 %v315, %v319
  %v324 = vadd.f32 %v316, %v319
  %s325 = scalar_lea.vmem %s2, 32
  %326 = vst [vmem:[%s325] sm:$0xff] %v321
  %327 = vst [vmem:[%s325 + $0x8] sm:$0xff] %v322
  %328 = vst [vmem:[%s325 + $0x10] sm:$0xff] %v323
  %329 = vst [vmem:[%s325 + $0x18] sm:$0xff] %v324
  // Predicated region
  $region10: #{forward.1} parent=0 // pred_check
    _
  $region11: #{forward.1} parent=0 // pred_check_branch
    %331 = sbr.rel (0) target = $region13
  $region12: #{forward.1} parent=0 // pred_region
    _
  $region13: #{forward.1} parent=0 // pred_fallthru
    _
  // Predicated region
  $region14: #{forward.1} parent=0 // pred_check
    _
  $region15: #{forward.1} parent=0 // pred_check_branch
    %333 = sbr.rel (0) target = $region17
  $region16: #{forward.1} parent=0 // pred_region
    _
  $region17: #{forward.1} parent=0 // pred_fallthru
    _

</llo_original>
